<compile_context>
chip_gen: v6e
topology: v6e:2x2x1
jax: 0.10.0
libtpu: 0.0.40
codegen_flags: <defaults>
</compile_context>

<pallas_src>
import jax
import jax.numpy as jnp
from jax.experimental import pallas as pl
from jax.experimental.pallas import tpu as pltpu

N_EMBD = 384          # fixed by the module definition
HEAD_SIZE = 64        # head_size passed to Head(head_size)
BLOCK_SIZE = 256      # causal buffer length (only T<=BLOCK_SIZE matters)
SLOT = 128            # lane-aligned per-projection slot width in fused weight


def _head_kernel(x_ref, w_ref, o_ref):
    # x_ref: (bb, T, C) f32/bf16
    # w_ref: (C, 3*SLOT) bf16 = [Wq*scale | 0 | Wk | 0 | Wv | 0]
    # o_ref: (bb, T, SLOT)  (upper SLOT-H lanes are zero padding)
    bb, T, C = x_ref.shape

    # Fused QKV projection: one (bb*T, C) x (C, 3*SLOT) bf16 matmul, f32 acc.
    x2d = x_ref[...].astype(jnp.bfloat16).reshape(bb * T, C)
    qkv = jnp.dot(x2d, w_ref[...], preferred_element_type=jnp.float32)
    qkv = qkv.reshape(bb, T, 3 * SLOT)

    # 128-lane aligned slices (free views, no sub-vreg extraction).
    q = qkv[:, :, 0:SLOT]                 # scale already folded into Wq
    k = qkv[:, :, SLOT:2 * SLOT]
    v = qkv[:, :, 2 * SLOT:3 * SLOT]      # upper 64 lanes are zeros

    # scores: contract last dims directly (no explicit k.T), batched over bb.
    # zero-padded lanes contribute 0*0 to the dot product.
    s = jax.lax.dot_general(
        q.astype(jnp.bfloat16), k.astype(jnp.bfloat16),
        dimension_numbers=(((2,), (2,)), ((0,), (0,))),
        preferred_element_type=jnp.float32)                 # (bb, T, T)

    # causal mask via broadcast compare (no full (T,T) iota pair).
    row = jax.lax.broadcasted_iota(jnp.int32, (T, 1), 0)
    col = jax.lax.broadcasted_iota(jnp.int32, (1, T), 1)
    causal = (row >= col)[None, :, :]                       # (1, T, T)
    s = jnp.where(causal, s, -jnp.inf)

    # numerically-stable softmax; normalize AFTER the PV matmul (cheaper:
    # scale (bb,T,128) instead of (bb,T,T)).
    m = jnp.max(s, axis=-1, keepdims=True)
    p = jnp.exp(s - m)
    denom = jnp.sum(p, axis=-1, keepdims=True)

    out = jax.lax.dot_general(
        p.astype(jnp.bfloat16), v.astype(jnp.bfloat16),
        dimension_numbers=(((2,), (1,)), ((0,), (0,))),
        preferred_element_type=jnp.float32)                 # (bb, T, SLOT)
    out = out * pl.reciprocal(denom, approx=True)

    o_ref[...] = out.astype(o_ref.dtype)                    # full 128-lane vst


def head_forward(x, wk, wq, wv, *, batch_block=None):
    """x: (B, T, C); w*: (C, H) -> (B, T, H), same dtype as x."""
    B, T, C = x.shape
    H = wq.shape[1]
    scale = H ** (-0.5)
    Npad = 3 * SLOT

    # One-time weight prep: fold the softmax scale into Wq, pad each
    # projection to a 128-lane slot, cast to bf16.
    def _slot(w):
        return jnp.pad(w.astype(jnp.float32), ((0, 0), (0, SLOT - w.shape[1])))

    w_qkv = jnp.concatenate(
        [_slot(wq * scale), _slot(wk), _slot(wv)], axis=1).astype(jnp.bfloat16)

    if batch_block is None:
        # VMEM-aware pick: keep the per-step footprint (double-buffered I/O
        # + in-kernel intermediates, dominated by the (bb,T,T) score tensors)
        # under ~20 MB so it fits v5e/v7x scoped VMEM with double-buffering.
        budget = 20 * 1024 * 1024

        def _fits(bb):
            io = 2 * bb * T * C * 4 + 2 * C * Npad * 2 + 2 * bb * T * SLOT * 4
            inter = (bb * T * C * 2           # x bf16 copy
                     + bb * T * Npad * 6      # qkv f32 + bf16 slices
                     + 3 * bb * T * T * 4     # s, exp, temps (f32)
                     + bb * T * T * 2         # p bf16
                     + 2 * bb * T * SLOT * 4) # out f32 + store temp
            return io + inter <= budget

        cap = max(1, B // 2)   # grid >= 2 so both v7x TensorCores get work
        batch_block = 1
        for bb in range(min(8, cap), 0, -1):
            if B % bb == 0 and _fits(bb):
                batch_block = bb
                break
    bb = batch_block
    assert B % bb == 0

    out_padded = pl.pallas_call(
        _head_kernel,
        out_shape=jax.ShapeDtypeStruct((B, T, SLOT), x.dtype),
        grid_spec=pltpu.PrefetchScalarGridSpec(
            num_scalar_prefetch=0,
            grid=(B // bb,),
            in_specs=[
                pl.BlockSpec((bb, T, C), lambda i: (i, 0, 0)),
                pl.BlockSpec((C, Npad), lambda i: (0, 0)),
            ],
            out_specs=pl.BlockSpec((bb, T, SLOT), lambda i: (i, 0, 0)),
        ),
        compiler_params=pltpu.CompilerParams(
            dimension_semantics=("parallel",),
            vmem_limit_bytes=32 * 1024 * 1024),
    )(x, w_qkv)

    # drop the zero-padded lanes outside the kernel (cheap XLA slice).
    return out_padded[:, :, :H]


def _reference(x, wk, wq, wv):
    k = x @ wk
    q = x @ wq
    v = x @ wv
    wei = (q @ jnp.swapaxes(k, -2, -1)) * (HEAD_SIZE ** -0.5)
    T = x.shape[1]
    tril = jnp.tril(jnp.ones((T, T)))
    wei = jnp.where(tril == 0, -jnp.inf, wei)
    wei = jax.nn.softmax(wei, axis=-1)
    return wei @ v


if __name__ == "__main__":
    key = jax.random.PRNGKey(0)
    kx, kk, kq, kv = jax.random.split(key, 4)

    B, T = 2, 8
    x = jax.random.normal(kx, (B, T, N_EMBD), dtype=jnp.float32)

    # deterministic init, roughly matching nn.Linear's uniform(-1/sqrt(C), 1/sqrt(C))
    bound = 1.0 / (N_EMBD ** 0.5)
    wk = jax.random.uniform(kk, (N_EMBD, HEAD_SIZE), jnp.float32, -bound, bound)
    wq = jax.random.uniform(kq, (N_EMBD, HEAD_SIZE), jnp.float32, -bound, bound)
    wv = jax.random.uniform(kv, (N_EMBD, HEAD_SIZE), jnp.float32, -bound, bound)

    out = head_forward(x, wk, wq, wv)
    out = jax.block_until_ready(out)

    ref = _reference(x, wk, wq, wv)
    assert out.shape == (B, T, HEAD_SIZE)
    # bf16 matmul inputs (f32 accumulation) + approx reciprocal -> loosened
    # tolerance vs. the pure-f32 reference.
    assert jnp.allclose(out, ref, atol=2e-2, rtol=2e-2), "mismatch vs reference"

    print("KERNEL_OK")
</pallas_src>

<mosaic_0001>
module attributes {stable_mosaic.version = 11 : i64} {
  func.func @_head_kernel(%arg0: i32, %arg1: memref<1x8x384xf32, #tpu.memory_space<vmem>>, %arg2: memref<384x384xbf16, #tpu.memory_space<vmem>>, %arg3: memref<1x8x128xf32, #tpu.memory_space<vmem>>) attributes {dimension_semantics = [#tpu.dimension_semantics<parallel>], iteration_bounds = array<i64: 2>, scalar_prefetch = 0 : i64, scratch_operands = 0 : i64, tpu.core_type = #tpu.core_type<tc>, window_params = [{transform_indices = @transform_0, window_bounds = array<i64: 1, 8, 384>}, {pipeline_mode = #tpu.pipeline_mode<synchronous>, transform_indices = @transform_1, window_bounds = array<i64: 384, 384>}, {transform_indices = @transform_2, window_bounds = array<i64: 1, 8, 128>}]} {
    %c0 = arith.constant 0 : index
    %c0_0 = arith.constant 0 : index
    %c0_1 = arith.constant 0 : index
    %0 = vector.load %arg1[%c0, %c0_0, %c0_1] : memref<1x8x384xf32, #tpu.memory_space<vmem>>, vector<1x8x384xf32>
    %1 = arith.truncf %0 : vector<1x8x384xf32> to vector<1x8x384xbf16>
    %2 = vector.shape_cast %1 : vector<1x8x384xbf16> to vector<8x384xbf16>
    %c0_2 = arith.constant 0 : index
    %c0_3 = arith.constant 0 : index
    %3 = vector.load %arg2[%c0_2, %c0_3] : memref<384x384xbf16, #tpu.memory_space<vmem>>, vector<384x384xbf16>
    %cst = arith.constant dense<0.000000e+00> : vector<8x384xf32>
    %4 = tpu.matmul %2, %3, %cst {dimension_numbers = #tpu.dot_dimension_numbers<[1], [0], [0], [1], [0, 0, 1, 1], [], []>} : vector<8x384xbf16>, vector<384x384xbf16>, vector<8x384xf32> -> vector<8x384xf32>
    %5 = vector.shape_cast %4 : vector<8x384xf32> to vector<1x8x384xf32>
    %6 = vector.extract_strided_slice %5 {offsets = [0, 0, 0], sizes = [1, 8, 128], strides = [1, 1, 1]} : vector<1x8x384xf32> to vector<1x8x128xf32>
    %7 = vector.extract_strided_slice %5 {offsets = [0, 0, 128], sizes = [1, 8, 128], strides = [1, 1, 1]} : vector<1x8x384xf32> to vector<1x8x128xf32>
    %8 = vector.extract_strided_slice %5 {offsets = [0, 0, 256], sizes = [1, 8, 128], strides = [1, 1, 1]} : vector<1x8x384xf32> to vector<1x8x128xf32>
    %9 = arith.truncf %6 : vector<1x8x128xf32> to vector<1x8x128xbf16>
    %10 = arith.truncf %7 : vector<1x8x128xf32> to vector<1x8x128xbf16>
    %cst_4 = arith.constant dense<0.000000e+00> : vector<1x8x8xf32>
    %11 = tpu.matmul %9, %10, %cst_4 {dimension_numbers = #tpu.dot_dimension_numbers<[2], [2], [1], [1], [0, 0, 0, 1, 1, 1], [0], [0]>} : vector<1x8x128xbf16>, vector<1x8x128xbf16>, vector<1x8x8xf32> -> vector<1x8x8xf32>
    %12 = tpu.iota {dimensions = array<i32: 0>} : vector<8x1xi32>
    %13 = tpu.iota {dimensions = array<i32: 1>} : vector<1x8xi32>
    %14 = vector.broadcast %12 : vector<8x1xi32> to vector<8x8xi32>
    %15 = vector.broadcast %13 : vector<1x8xi32> to vector<8x8xi32>
    %16 = arith.cmpi sge, %14, %15 : vector<8x8xi32>
    %17 = vector.shape_cast %16 : vector<8x8xi1> to vector<1x8x8xi1>
    %cst_5 = arith.constant 0xFF800000 : f32
    %18 = vector.broadcast %cst_5 : f32 to vector<1x8x8xf32>
    %19 = arith.select %17, %11, %18 : vector<1x8x8xi1>, vector<1x8x8xf32>
    %cst_6 = arith.constant dense<0xFF800000> : vector<1x8xf32>
    %20 = vector.multi_reduction <maximumf>, %19, %cst_6 [2] : vector<1x8x8xf32> to vector<1x8xf32>
    %21 = vector.shape_cast %20 : vector<1x8xf32> to vector<1x8x1xf32>
    %22 = vector.broadcast %21 : vector<1x8x1xf32> to vector<1x8x8xf32>
    %23 = arith.subf %19, %22 : vector<1x8x8xf32>
    %24 = math.exp %23 : vector<1x8x8xf32>
    %cst_7 = arith.constant dense<0.000000e+00> : vector<1x8xf32>
    %25 = vector.multi_reduction <add>, %24, %cst_7 [2] : vector<1x8x8xf32> to vector<1x8xf32>
    %26 = vector.shape_cast %25 : vector<1x8xf32> to vector<1x8x1xf32>
    %27 = arith.truncf %24 : vector<1x8x8xf32> to vector<1x8x8xbf16>
    %28 = arith.truncf %8 : vector<1x8x128xf32> to vector<1x8x128xbf16>
    %cst_8 = arith.constant dense<0.000000e+00> : vector<1x8x128xf32>
    %29 = tpu.matmul %27, %28, %cst_8 {dimension_numbers = #tpu.dot_dimension_numbers<[2], [1], [1], [2], [0, 0, 0, 1, 1, 2], [0], [0]>} : vector<1x8x8xbf16>, vector<1x8x128xbf16>, vector<1x8x128xf32> -> vector<1x8x128xf32>
    %30 = tpu.reciprocal %26 {approx = true} : vector<1x8x1xf32> -> vector<1x8x1xf32>
    %31 = vector.broadcast %30 : vector<1x8x1xf32> to vector<1x8x128xf32>
    %32 = arith.mulf %29, %31 : vector<1x8x128xf32>
    %c0_9 = arith.constant 0 : index
    %c0_10 = arith.constant 0 : index
    %c0_11 = arith.constant 0 : index
    %33 = vector.load %arg3[%c0_9, %c0_10, %c0_11] : memref<1x8x128xf32, #tpu.memory_space<vmem>>, vector<1x8x128xf32>
    tpu.vector_store %arg3[%c0_9, %c0_10, %c0_11], %32 {strides = array<i32>} : memref<1x8x128xf32, #tpu.memory_space<vmem>>, vector<1x8x128xf32>,
    return
  }
  func.func @transform_0(%arg0: i32) -> (i32, i32, i32) {
    %c0_i32 = arith.constant 0 : i32
    %c0_i32_0 = arith.constant 0 : i32
    %c0_i32_1 = arith.constant 0 : i32
    return %arg0, %c0_i32, %c0_i32_0 : i32, i32, i32
  }
  func.func @transform_1(%arg0: i32) -> (i32, i32) {
    %c0_i32 = arith.constant 0 : i32
    %c0_i32_0 = arith.constant 0 : i32
    %c0_i32_1 = arith.constant 0 : i32
    return %c0_i32, %c0_i32_0 : i32, i32
  }
  func.func @transform_2(%arg0: i32) -> (i32, i32, i32) {
    %c0_i32 = arith.constant 0 : i32
    %c0_i32_0 = arith.constant 0 : i32
    %c0_i32_1 = arith.constant 0 : i32
    return %arg0, %c0_i32, %c0_i32_0 : i32, i32, i32
  }
}

</mosaic_0001>

<llo_original>
// kernel: tpu_custom_call.1
$region0: #{tpu_custom_call.1}
  #allocation0 [shape = 'u32[]', space=smem, size = 0x4, offset = 0x4, fixed_abs, tag = 'smem constant byte address 0x4 - core index']
  #allocation1 [shape = 'u32[144,128]{1,0:T(1,128)}', space=vmem, size = 0x12000, scoped, tag = 'internal scratch']
  %s0 = inlined_call_operand.hbm [shape: f32[2,8,384], index: 0, kind: input, shape index: {}]
  %s1 = inlined_call_operand.hbm [shape: bf16[384,384], index: 1, kind: input, shape index: {}]
  %s2 = inlined_call_operand.hbm [shape: f32[2,8,128], index: 2, kind: output, shape index: {}]
  %s3 = sld [smem:[#allocation0]]
  $region49: #{tpu_custom_call.1} parent=0
    _
  %s5 = ssub.s32 1, %s3
  %s6 = scalar_select 0, %s5, %s3
  $region1: #{tpu_custom_call.1} parent=0
    #allocation2 [shape = 'u8[24576]{0}', space=vmem, size = 0x6000, scoped, tag = 'input window, operand 0']
    #allocation3 [shape = 's32[2]{0}', space=sflag, size = 0x8, scoped, tag = 'scoped memory for tpu_custom_call.1']
    #allocation4 [shape = 's32[2]{0}', space=sflag, size = 0x8, scoped, tag = 'scoped memory for tpu_custom_call.1']
    #allocation5 [shape = 'u8[294912]{0}', space=vmem, size = 0x48000, scoped, tag = 'input window, operand 1, single buffered']
    #allocation6 [shape = 's32[1]{0}', space=sflag, size = 0x4, scoped, tag = 'scoped memory for tpu_custom_call.1']
    #allocation7 [shape = 'u8[8192]{0}', space=vmem, size = 0x2000, scoped, tag = 'output window, operand 0']
    %7 = vsyncpa [#allocation3], 0
    %s8 = scalar_lea.sflag [#allocation3], 1
    %9 = vsyncpa %s8, 0
    %10 = vsyncpa [#allocation6], 0
    %11 = vsyncpa [#allocation4], 0
    %s12 = scalar_lea.sflag [#allocation4], 1
    %13 = vsyncpa %s12, 0
    loop: start=0, step=1, limit=4
    $region2: #{tpu_custom_call.1} parent=1 // loop_pre_header
      _
    $region3: #{tpu_custom_call.1} parent=1 // loop_header
      %s15 = sphi 0, %s19
      %p16 = scmp.ge.s32.totalorder %s15, 4
      %s25 = sphi 0, %s27
      %s28 = sphi 0, %s25
      %s29 = sphi 0, %s28
      %s45 = sphi 0, %s29
      %s49 = sphi 0, %s49
      %s51 = sphi 0, %s49
      %s52 = sphi 0, %s51
      %s66 = sphi 0, %s52
      %s72 = sphi 0, %s74
      %s75 = sphi 0, %s72
      %s76 = sphi 0, %s75
      %s92 = sphi 0, %s76
    $region4: #{tpu_custom_call.1} parent=1 // loop_header_branch
      %18 = sbr.rel (%p16) target = $region8
    $region5: #{tpu_custom_call.1} parent=1 // loop_body
      %s20 = ssub.s32 %s15, 1
      %s21 = ssub.s32 %s15, 2
      %s22 = sadd.s32 %s15, 1
      %s23 = ssub.s32 %s15, %s22
      %p24 = scmp.eq.s32.totalorder %s23, 0
      %s26 = sadd.s32 %s25, 1
      %s27 = scalar_select %p24, %s25, %s26
      %p30 = pneg %p24
      %p31 = scmp.eq.s32.totalorder %s15, 1
      %p32 = por %p30, %p31
      %p33 = scmp.ne.s32.totalorder %s25, %s28
      %p34 = scmp.eq.s32.totalorder %s15, 0
      %p35 = por %p33, %p34
      %p36 = scmp.ne.s32.totalorder %s25, %s28
      %p37 = scmp.eq.s32.totalorder %s20, 1
      %p38 = por %p36, %p37
      %p39 = scmp.ne.s32.totalorder %s28, %s29
      %p40 = scmp.eq.s32.totalorder %s20, 0
      %p41 = por %p39, %p40
      %p42 = scmp.ne.s32.totalorder %s28, %s29
      %p43 = scmp.eq.s32.totalorder %s21, 1
      %p44 = por %p42, %p43
      %p46 = scmp.ne.s32.totalorder %s29, %s45
      %p47 = scmp.eq.s32.totalorder %s21, 0
      %p48 = por %p46, %p47
      %s50 = sadd.s32 %s49, 1
      %p53 = scmp.eq.s32.totalorder %s15, 1
      %p54 = scmp.ne.s32.totalorder %s49, %s51
      %p55 = scmp.eq.s32.totalorder %s15, 0
      %p56 = por %p54, %p55
      %p57 = scmp.ne.s32.totalorder %s49, %s51
      %p58 = scmp.eq.s32.totalorder %s20, 1
      %p59 = por %p57, %p58
      %p60 = scmp.ne.s32.totalorder %s51, %s52
      %p61 = scmp.eq.s32.totalorder %s20, 0
      %p62 = por %p60, %p61
      %p63 = scmp.ne.s32.totalorder %s51, %s52
      %p64 = scmp.eq.s32.totalorder %s21, 1
      %p65 = por %p63, %p64
      %p67 = scmp.ne.s32.totalorder %s52, %s66
      %p68 = scmp.eq.s32.totalorder %s21, 0
      %p69 = por %p67, %p68
      %s70 = ssub.s32 %s15, %s22
      %p71 = scmp.eq.s32.totalorder %s70, 0
      %s73 = sadd.s32 %s72, 1
      %s74 = scalar_select %p71, %s72, %s73
      %p77 = pneg %p71
      %p78 = scmp.eq.s32.totalorder %s15, 1
      %p79 = por %p77, %p78
      %p80 = scmp.ne.s32.totalorder %s72, %s75
      %p81 = scmp.eq.s32.totalorder %s15, 0
      %p82 = por %p80, %p81
      %p83 = scmp.ne.s32.totalorder %s72, %s75
      %p84 = scmp.eq.s32.totalorder %s20, 1
      %p85 = por %p83, %p84
      %p86 = scmp.ne.s32.totalorder %s75, %s76
      %p87 = scmp.eq.s32.totalorder %s20, 0
      %p88 = por %p86, %p87
      %p89 = scmp.ne.s32.totalorder %s75, %s76
      %p90 = scmp.eq.s32.totalorder %s21, 1
      %p91 = por %p89, %p90
      %p93 = scmp.ne.s32.totalorder %s76, %s92
      %p94 = scmp.eq.s32.totalorder %s21, 0
      %p95 = por %p93, %p94
      %p96 = scmp.le.s32.totalorder 1, %s15
      %p97 = scmp.lt.s32.totalorder %s15, 3
      %p98 = pnand %p96, %p97
      %p99 = pneg %p98
      // Predicated region
      $region9: #{tpu_custom_call.1} parent=5 // pred_check
        _
      $region10: #{tpu_custom_call.1} parent=5 // pred_check_branch
        %101 = sbr.rel (%p98) target = $region12
      $region11: #{tpu_custom_call.1} parent=5 // pred_region
        %s102 = ssub.s32 %s15, 1
        // Predicated region
        $region13: #{tpu_custom_call.1} parent=11 // pred_check
          %p103 = pneg %p62
        $region14: #{tpu_custom_call.1} parent=11 // pred_check_branch
          %105 = sbr.rel (%p103) target = $region16
        $region15: #{tpu_custom_call.1} parent=11 // pred_region
          %s107 = ssub.s32 9216, 9216
          %108 = vsyncadd [#allocation6], %s107
          %s109 = sshll.u32 [#allocation5], 4
          %s110 = int_to_ptr.vmem [resolvable:$true] %s109
          %115 = dma.hbm_to_vmem [thread:$0]  %s1, 9216, %s110, [#allocation6], 192, 192, 12
        $region16: #{tpu_custom_call.1} parent=11 // pred_fallthru
          _
      $region12: #{tpu_custom_call.1} parent=5 // pred_fallthru
        _
      %p116 = scmp.lt.s32.totalorder %s15, 2
      // Predicated region
      $region17: #{tpu_custom_call.1} parent=5 // pred_check
        %p117 = pneg %p116
      $region18: #{tpu_custom_call.1} parent=5 // pred_check_branch
        %119 = sbr.rel (%p117) target = $region20
      $region19: #{tpu_custom_call.1} parent=5 // pred_region
        // Predicated region
        $region21: #{tpu_custom_call.1} parent=19 // pred_check
          %p120 = pneg %p35
        $region22: #{tpu_custom_call.1} parent=19 // pred_check_branch
          %122 = sbr.rel (%p120) target = $region24
        $region23: #{tpu_custom_call.1} parent=19 // pred_region
          %s123 = sand.u32 %s25, 1
          %s124 = scalar_lea.sflag [#allocation3], %s123
          %s125 = sand.u32 %s25, 1
          %s126 = smul.addr %s125, 24
          %s127 = scalar_lea.vmem [#allocation2], %s126
          %s129 = ssub.s32 384, 384
          %130 = vsyncadd %s124, %s129
          %s131 = smul.addr %s15, 3
          %s132 = smul.addr %s131, 128
          %s133 = scalar_lea.hbm %s0, %s132
          %s135 = sshll.u32 %s127, 4
          %s136 = int_to_ptr.vmem [resolvable:$true] %s135
          %138 = dma.hbm_to_vmem [thread:$0]  %s133, 384, %s136, %s124
        $region24: #{tpu_custom_call.1} parent=19 // pred_fallthru
          _
      $region20: #{tpu_custom_call.1} parent=5 // pred_fallthru
        _
      %p139 = scmp.le.s32.totalorder 1, %s15
      %p140 = scmp.lt.s32.totalorder %s15, 3
      %p141 = pnand %p139, %p140
      %p142 = pneg %p141
      // Predicated region
      $region25: #{tpu_custom_call.1} parent=5 // pred_check
        _
      $region26: #{tpu_custom_call.1} parent=5 // pred_check_branch
        %144 = sbr.rel (%p141) target = $region28
      $region27: #{tpu_custom_call.1} parent=5 // pred_region
        %s145 = ssub.s32 %s15, 1
        %s146 = sand.u32 %s28, 1
        %s147 = scalar_lea.sflag [#allocation3], %s146
        %s148 = sand.u32 %s28, 1
        %s149 = smul.addr %s148, 24
        %s150 = scalar_lea.vmem [#allocation2], %s149
        // Predicated region
        $region29: #{tpu_custom_call.1} parent=27 // pred_check
          %p151 = pneg %p41
        $region30: #{tpu_custom_call.1} parent=27 // pred_check_branch
          %153 = sbr.rel (%p151) target = $region32
        $region31: #{tpu_custom_call.1} parent=27 // pred_region
          %154 = dma.done %s147, 384
        $region32: #{tpu_custom_call.1} parent=27 // pred_fallthru
          _
        // Predicated region
        $region33: #{tpu_custom_call.1} parent=27 // pred_check
          %p155 = pneg %p62
        $region34: #{tpu_custom_call.1} parent=27 // pred_check_branch
          %157 = sbr.rel (%p155) target = $region36
        $region35: #{tpu_custom_call.1} parent=27 // pred_region
          %158 = dma.done [#allocation6], 9216
        $region36: #{tpu_custom_call.1} parent=27 // pred_fallthru
          _
        %s159 = sand.u32 %s28, 1
        %s160 = scalar_lea.sflag [#allocation3], %s159
        %s161 = sand.u32 %s28, 1
        %s162 = smul.addr %s161, 24
        %s163 = scalar_lea.vmem [#allocation2], %s162
        %p164 = pneg %p41
        %p165 = pneg %p38
        %p166 = pneg %p62
        %p167 = pneg %p59
        %p168 = pneg %p88
        %p169 = pneg %p85
        %s170 = sand.u32 %s75, 1
        %s171 = scalar_lea.sflag [#allocation4], %s170
        %s172 = sand.u32 %s75, 1
        %s173 = smul.addr %s172, 8
        %s174 = scalar_lea.vmem [#allocation7], %s173
        %v176 = vld [vmem:[%s150] sm:$0xff]
        %v177 = vld [vmem:[%s150 + $0x8] sm:$0xff]
        %v178 = vld [vmem:[%s150 + $0x10] sm:$0xff]
        %v179 = vpack.c.bf16 %v176, %v176
        %v180 = vpack.c.bf16 %v177, %v177
        %v181 = vpack.c.bf16 %v178, %v178
        %v182 = vld [vmem:[#allocation5] sm:$0xff]
        %v183 = vld [vmem:[#allocation5 + $0x8] sm:$0xf]
        %v184 = vld [vmem:[#allocation5 + $0xc] sm:$0xff]
        %v185 = vld [vmem:[#allocation5 + $0x14] sm:$0xf]
        %v186 = vld [vmem:[#allocation5 + $0x18] sm:$0xff]
        %v187 = vld [vmem:[#allocation5 + $0x20] sm:$0xf]
        %v188 = vld [vmem:[#allocation5 + $0x24] sm:$0xff]
        %v189 = vld [vmem:[#allocation5 + $0x2c] sm:$0xf]
        %v190 = vld [vmem:[#allocation5 + $0x30] sm:$0xff]
        %v191 = vld [vmem:[#allocation5 + $0x38] sm:$0xf]
        %v192 = vld [vmem:[#allocation5 + $0x3c] sm:$0xff]
        %v193 = vld [vmem:[#allocation5 + $0x44] sm:$0xf]
        %v194 = vld [vmem:[#allocation5 + $0x48] sm:$0xff]
        %v195 = vld [vmem:[#allocation5 + $0x50] sm:$0xf]
        %v196 = vld [vmem:[#allocation5 + $0x54] sm:$0xff]
        %v197 = vld [vmem:[#allocation5 + $0x5c] sm:$0xf]
        %v198 = vld [vmem:[#allocation5 + $0x60] sm:$0xff]
        %v199 = vld [vmem:[#allocation5 + $0x68] sm:$0xf]
        %v200 = vld [vmem:[#allocation5 + $0x6c] sm:$0xff]
        %v201 = vld [vmem:[#allocation5 + $0x74] sm:$0xf]
        %v202 = vld [vmem:[#allocation5 + $0x78] sm:$0xff]
        %v203 = vld [vmem:[#allocation5 + $0x80] sm:$0xf]
        %v204 = vld [vmem:[#allocation5 + $0x84] sm:$0xff]
        %v205 = vld [vmem:[#allocation5 + $0x8c] sm:$0xf]
        %v206 = vld [vmem:[#allocation5 + $0x90] sm:$0xff]
        %v207 = vld [vmem:[#allocation5 + $0x98] sm:$0xf]
        %v208 = vld [vmem:[#allocation5 + $0x9c] sm:$0xff]
        %v209 = vld [vmem:[#allocation5 + $0xa4] sm:$0xf]
        %v210 = vld [vmem:[#allocation5 + $0xa8] sm:$0xff]
        %v211 = vld [vmem:[#allocation5 + $0xb0] sm:$0xf]
        %v212 = vld [vmem:[#allocation5 + $0xb4] sm:$0xff]
        %v213 = vld [vmem:[#allocation5 + $0xbc] sm:$0xf]
        %v214 = vld [vmem:[#allocation5 + $0xc0] sm:$0xff]
        %v215 = vld [vmem:[#allocation5 + $0xc8] sm:$0xf]
        %v216 = vld [vmem:[#allocation5 + $0xcc] sm:$0xff]
        %v217 = vld [vmem:[#allocation5 + $0xd4] sm:$0xf]
        %v218 = vld [vmem:[#allocation5 + $0xd8] sm:$0xff]
        %v219 = vld [vmem:[#allocation5 + $0xe0] sm:$0xf]
        %v220 = vld [vmem:[#allocation5 + $0xe4] sm:$0xff]
        %v221 = vld [vmem:[#allocation5 + $0xec] sm:$0xf]
        %v222 = vld [vmem:[#allocation5 + $0xf0] sm:$0xff]
        %v223 = vld [vmem:[#allocation5 + $0xf8] sm:$0xf]
        %v224 = vld [vmem:[#allocation5 + $0xfc] sm:$0xff]
        %v225 = vld [vmem:[#allocation5 + $0x104] sm:$0xf]
        %v226 = vld [vmem:[#allocation5 + $0x108] sm:$0xff]
        %v227 = vld [vmem:[#allocation5 + $0x110] sm:$0xf]
        %v228 = vld [vmem:[#allocation5 + $0x114] sm:$0xff]
        %v229 = vld [vmem:[#allocation5 + $0x11c] sm:$0xf]
        %v230 = vld [vmem:[#allocation5 + $0x120] sm:$0xff]
        %v231 = vld [vmem:[#allocation5 + $0x128] sm:$0xf]
        %v232 = vld [vmem:[#allocation5 + $0x12c] sm:$0xff]
        %v233 = vld [vmem:[#allocation5 + $0x134] sm:$0xf]
        %v234 = vld [vmem:[#allocation5 + $0x138] sm:$0xff]
        %v235 = vld [vmem:[#allocation5 + $0x140] sm:$0xf]
        %v236 = vld [vmem:[#allocation5 + $0x144] sm:$0xff]
        %v237 = vld [vmem:[#allocation5 + $0x14c] sm:$0xf]
        %v238 = vld [vmem:[#allocation5 + $0x150] sm:$0xff]
        %v239 = vld [vmem:[#allocation5 + $0x158] sm:$0xf]
        %v240 = vld [vmem:[#allocation5 + $0x15c] sm:$0xff]
        %v241 = vld [vmem:[#allocation5 + $0x164] sm:$0xf]
        %v242 = vld [vmem:[#allocation5 + $0x168] sm:$0xff]
        %v243 = vld [vmem:[#allocation5 + $0x170] sm:$0xf]
        %v244 = vld [vmem:[#allocation5 + $0x174] sm:$0xff]
        %v245 = vld [vmem:[#allocation5 + $0x17c] sm:$0xf]
        %v246 = vld [vmem:[#allocation5 + $0x180] sm:$0xff]
        %v247 = vld [vmem:[#allocation5 + $0x188] sm:$0xf]
        %v248 = vld [vmem:[#allocation5 + $0x18c] sm:$0xff]
        %v249 = vld [vmem:[#allocation5 + $0x194] sm:$0xf]
        %v250 = vld [vmem:[#allocation5 + $0x198] sm:$0xff]
        %v251 = vld [vmem:[#allocation5 + $0x1a0] sm:$0xf]
        %v252 = vld [vmem:[#allocation5 + $0x1a4] sm:$0xff]
        %v253 = vld [vmem:[#allocation5 + $0x1ac] sm:$0xf]
        %v254 = vld [vmem:[#allocation5 + $0x1b0] sm:$0xff]
        %v255 = vld [vmem:[#allocation5 + $0x1b8] sm:$0xf]
        %v256 = vld [vmem:[#allocation5 + $0x1bc] sm:$0xff]
        %v257 = vld [vmem:[#allocation5 + $0x1c4] sm:$0xf]
        %v258 = vld [vmem:[#allocation5 + $0x1c8] sm:$0xff]
        %v259 = vld [vmem:[#allocation5 + $0x1d0] sm:$0xf]
        %v260 = vld [vmem:[#allocation5 + $0x1d4] sm:$0xff]
        %v261 = vld [vmem:[#allocation5 + $0x1dc] sm:$0xf]
        %v262 = vld [vmem:[#allocation5 + $0x1e0] sm:$0xff]
        %v263 = vld [vmem:[#allocation5 + $0x1e8] sm:$0xf]
        %v264 = vld [vmem:[#allocation5 + $0x1ec] sm:$0xff]
        %v265 = vld [vmem:[#allocation5 + $0x1f4] sm:$0xf]
        %v266 = vld [vmem:[#allocation5 + $0x1f8] sm:$0xff]
        %v267 = vld [vmem:[#allocation5 + $0x200] sm:$0xf]
        %v268 = vld [vmem:[#allocation5 + $0x204] sm:$0xff]
        %v269 = vld [vmem:[#allocation5 + $0x20c] sm:$0xf]
        %v270 = vld [vmem:[#allocation5 + $0x210] sm:$0xff]
        %v271 = vld [vmem:[#allocation5 + $0x218] sm:$0xf]
        %v272 = vld [vmem:[#allocation5 + $0x21c] sm:$0xff]
        %v273 = vld [vmem:[#allocation5 + $0x224] sm:$0xf]
        %v274 = vld [vmem:[#allocation5 + $0x228] sm:$0xff]
        %v275 = vld [vmem:[#allocation5 + $0x230] sm:$0xf]
        %v276 = vld [vmem:[#allocation5 + $0x234] sm:$0xff]
        %v277 = vld [vmem:[#allocation5 + $0x23c] sm:$0xf]
        %v374 = vunpack.c.l.b16 %v182
        %v375 = vunpack.c.h.b16 %v182
        %v376 = vunpack.c.l.b16 %v183
        %v377 = vunpack.c.l.b16 %v184
        %v378 = vunpack.c.h.b16 %v184
        %v379 = vunpack.c.l.b16 %v185
        %v380 = vunpack.c.l.b16 %v186
        %v381 = vunpack.c.h.b16 %v186
        %v382 = vunpack.c.l.b16 %v187
        %v383 = vunpack.c.l.b16 %v188
        %v384 = vunpack.c.h.b16 %v188
        %v385 = vunpack.c.l.b16 %v189
        %v386 = vunpack.c.l.b16 %v190
        %v387 = vunpack.c.h.b16 %v190
        %v388 = vunpack.c.l.b16 %v191
        %v389 = vunpack.c.l.b16 %v192
        %v390 = vunpack.c.h.b16 %v192
        %v391 = vunpack.c.l.b16 %v193
        %v392 = vunpack.c.l.b16 %v194
        %v393 = vunpack.c.h.b16 %v194
        %v394 = vunpack.c.l.b16 %v195
        %v395 = vunpack.c.l.b16 %v196
        %v396 = vunpack.c.h.b16 %v196
        %v397 = vunpack.c.l.b16 %v197
        %v398 = vunpack.c.l.b16 %v198
        %v399 = vunpack.c.h.b16 %v198
        %v400 = vunpack.c.l.b16 %v199
        %v401 = vunpack.c.l.b16 %v200
        %v402 = vunpack.c.h.b16 %v200
        %v403 = vunpack.c.l.b16 %v201
        %v404 = vunpack.c.l.b16 %v202
        %v405 = vunpack.c.h.b16 %v202
        %v406 = vunpack.c.l.b16 %v203
        %v407 = vunpack.c.l.b16 %v204
        %v408 = vunpack.c.h.b16 %v204
        %v409 = vunpack.c.l.b16 %v205
        %v410 = vunpack.c.l.b16 %v206
        %v411 = vunpack.c.h.b16 %v206
        %v412 = vunpack.c.l.b16 %v207
        %v413 = vunpack.c.l.b16 %v208
        %v414 = vunpack.c.h.b16 %v208
        %v415 = vunpack.c.l.b16 %v209
        %v416 = vunpack.c.l.b16 %v210
        %v417 = vunpack.c.h.b16 %v210
        %v418 = vunpack.c.l.b16 %v211
        %v419 = vunpack.c.l.b16 %v212
        %v420 = vunpack.c.h.b16 %v212
        %v421 = vunpack.c.l.b16 %v213
        %v422 = vunpack.c.l.b16 %v214
        %v423 = vunpack.c.h.b16 %v214
        %v424 = vunpack.c.l.b16 %v215
        %v425 = vunpack.c.l.b16 %v216
        %v426 = vunpack.c.h.b16 %v216
        %v427 = vunpack.c.l.b16 %v217
        %v428 = vunpack.c.l.b16 %v218
        %v429 = vunpack.c.h.b16 %v218
        %v430 = vunpack.c.l.b16 %v219
        %v431 = vunpack.c.l.b16 %v220
        %v432 = vunpack.c.h.b16 %v220
        %v433 = vunpack.c.l.b16 %v221
        %v434 = vunpack.c.l.b16 %v222
        %v435 = vunpack.c.h.b16 %v222
        %v436 = vunpack.c.l.b16 %v223
        %v437 = vunpack.c.l.b16 %v224
        %v438 = vunpack.c.h.b16 %v224
        %v439 = vunpack.c.l.b16 %v225
        %v440 = vunpack.c.l.b16 %v226
        %v441 = vunpack.c.h.b16 %v226
        %v442 = vunpack.c.l.b16 %v227
        %v443 = vunpack.c.l.b16 %v228
        %v444 = vunpack.c.h.b16 %v228
        %v445 = vunpack.c.l.b16 %v229
        %v446 = vunpack.c.l.b16 %v230
        %v447 = vunpack.c.h.b16 %v230
        %v448 = vunpack.c.l.b16 %v231
        %v449 = vunpack.c.l.b16 %v232
        %v450 = vunpack.c.h.b16 %v232
        %v451 = vunpack.c.l.b16 %v233
        %v452 = vunpack.c.l.b16 %v234
        %v453 = vunpack.c.h.b16 %v234
        %v454 = vunpack.c.l.b16 %v235
        %v455 = vunpack.c.l.b16 %v236
        %v456 = vunpack.c.h.b16 %v236
        %v457 = vunpack.c.l.b16 %v237
        %v458 = vunpack.c.l.b16 %v238
        %v459 = vunpack.c.h.b16 %v238
        %v460 = vunpack.c.l.b16 %v239
        %v461 = vunpack.c.l.b16 %v240
        %v462 = vunpack.c.h.b16 %v240
        %v463 = vunpack.c.l.b16 %v241
        %v464 = vunpack.c.l.b16 %v242
        %v465 = vunpack.c.h.b16 %v242
        %v466 = vunpack.c.l.b16 %v243
        %v467 = vunpack.c.l.b16 %v244
        %v468 = vunpack.c.h.b16 %v244
        %v469 = vunpack.c.l.b16 %v245
        %v470 = vunpack.c.l.b16 %v246
        %v471 = vunpack.c.h.b16 %v246
        %v472 = vunpack.c.l.b16 %v247
        %v473 = vunpack.c.l.b16 %v248
        %v474 = vunpack.c.h.b16 %v248
        %v475 = vunpack.c.l.b16 %v249
        %v476 = vunpack.c.l.b16 %v250
        %v477 = vunpack.c.h.b16 %v250
        %v478 = vunpack.c.l.b16 %v251
        %v479 = vunpack.c.l.b16 %v252
        %v480 = vunpack.c.h.b16 %v252
        %v481 = vunpack.c.l.b16 %v253
        %v482 = vunpack.c.l.b16 %v254
        %v483 = vunpack.c.h.b16 %v254
        %v484 = vunpack.c.l.b16 %v255
        %v485 = vunpack.c.l.b16 %v256
        %v486 = vunpack.c.h.b16 %v256
        %v487 = vunpack.c.l.b16 %v257
        %v488 = vunpack.c.l.b16 %v258
        %v489 = vunpack.c.h.b16 %v258
        %v490 = vunpack.c.l.b16 %v259
        %v491 = vunpack.c.l.b16 %v260
        %v492 = vunpack.c.h.b16 %v260
        %v493 = vunpack.c.l.b16 %v261
        %v494 = vunpack.c.l.b16 %v262
        %v495 = vunpack.c.h.b16 %v262
        %v496 = vunpack.c.l.b16 %v263
        %v497 = vunpack.c.l.b16 %v264
        %v498 = vunpack.c.h.b16 %v264
        %v499 = vunpack.c.l.b16 %v265
        %v500 = vunpack.c.l.b16 %v266
        %v501 = vunpack.c.h.b16 %v266
        %v502 = vunpack.c.l.b16 %v267
        %v503 = vunpack.c.l.b16 %v268
        %v504 = vunpack.c.h.b16 %v268
        %v505 = vunpack.c.l.b16 %v269
        %v506 = vunpack.c.l.b16 %v270
        %v507 = vunpack.c.h.b16 %v270
        %v508 = vunpack.c.l.b16 %v271
        %v509 = vunpack.c.l.b16 %v272
        %v510 = vunpack.c.h.b16 %v272
        %v511 = vunpack.c.l.b16 %v273
        %v512 = vunpack.c.l.b16 %v274
        %v513 = vunpack.c.h.b16 %v274
        %v514 = vunpack.c.l.b16 %v275
        %v515 = vunpack.c.l.b16 %v276
        %v516 = vunpack.c.h.b16 %v276
        %v517 = vunpack.c.l.b16 %v277
        %v518 = vpack.c.b16 %v377, %v374
        %v519 = vpack.c.b16 %v378, %v375
        %v520 = vpack.c.b16 %v379, %v376
        %v521 = vpack.c.b16 %v383, %v380
        %v522 = vpack.c.b16 %v384, %v381
        %v523 = vpack.c.b16 %v385, %v382
        %v524 = vpack.c.b16 %v389, %v386
        %v525 = vpack.c.b16 %v390, %v387
        %v526 = vpack.c.b16 %v391, %v388
        %v527 = vpack.c.b16 %v395, %v392
        %v528 = vpack.c.b16 %v396, %v393
        %v529 = vpack.c.b16 %v397, %v394
        %v530 = vpack.c.b16 %v401, %v398
        %v531 = vpack.c.b16 %v402, %v399
        %v532 = vpack.c.b16 %v403, %v400
        %v533 = vpack.c.b16 %v407, %v404
        %v534 = vpack.c.b16 %v408, %v405
        %v535 = vpack.c.b16 %v409, %v406
        %v536 = vpack.c.b16 %v413, %v410
        %v537 = vpack.c.b16 %v414, %v411
        %v538 = vpack.c.b16 %v415, %v412
        %v539 = vpack.c.b16 %v419, %v416
        %v540 = vpack.c.b16 %v420, %v417
        %v541 = vpack.c.b16 %v421, %v418
        %v542 = vpack.c.b16 %v425, %v422
        %v543 = vpack.c.b16 %v426, %v423
        %v544 = vpack.c.b16 %v427, %v424
        %v545 = vpack.c.b16 %v431, %v428
        %v546 = vpack.c.b16 %v432, %v429
        %v547 = vpack.c.b16 %v433, %v430
        %v548 = vpack.c.b16 %v437, %v434
        %v549 = vpack.c.b16 %v438, %v435
        %v550 = vpack.c.b16 %v439, %v436
        %v551 = vpack.c.b16 %v443, %v440
        %v552 = vpack.c.b16 %v444, %v441
        %v553 = vpack.c.b16 %v445, %v442
        %v554 = vpack.c.b16 %v449, %v446
        %v555 = vpack.c.b16 %v450, %v447
        %v556 = vpack.c.b16 %v451, %v448
        %v557 = vpack.c.b16 %v455, %v452
        %v558 = vpack.c.b16 %v456, %v453
        %v559 = vpack.c.b16 %v457, %v454
        %v560 = vpack.c.b16 %v461, %v458
        %v561 = vpack.c.b16 %v462, %v459
        %v562 = vpack.c.b16 %v463, %v460
        %v563 = vpack.c.b16 %v467, %v464
        %v564 = vpack.c.b16 %v468, %v465
        %v565 = vpack.c.b16 %v469, %v466
        %v566 = vpack.c.b16 %v473, %v470
        %v567 = vpack.c.b16 %v474, %v471
        %v568 = vpack.c.b16 %v475, %v472
        %v569 = vpack.c.b16 %v479, %v476
        %v570 = vpack.c.b16 %v480, %v477
        %v571 = vpack.c.b16 %v481, %v478
        %v572 = vpack.c.b16 %v485, %v482
        %v573 = vpack.c.b16 %v486, %v483
        %v574 = vpack.c.b16 %v487, %v484
        %v575 = vpack.c.b16 %v491, %v488
        %v576 = vpack.c.b16 %v492, %v489
        %v577 = vpack.c.b16 %v493, %v490
        %v578 = vpack.c.b16 %v497, %v494
        %v579 = vpack.c.b16 %v498, %v495
        %v580 = vpack.c.b16 %v499, %v496
        %v581 = vpack.c.b16 %v503, %v500
        %v582 = vpack.c.b16 %v504, %v501
        %v583 = vpack.c.b16 %v505, %v502
        %v584 = vpack.c.b16 %v509, %v506
        %v585 = vpack.c.b16 %v510, %v507
        %v586 = vpack.c.b16 %v511, %v508
        %v587 = vpack.c.b16 %v515, %v512
        %v588 = vpack.c.b16 %v516, %v513
        %v589 = vpack.c.b16 %v517, %v514
        %662 = vmatprep.subr.bf16.mxu0 %v540
        %663 = vmatpush1.bf16.msra.mxu0 %v539
        %664 = vmatprep.subr.bf16.mxu0 %v537
        %665 = vmatpush1.bf16.msra.mxu0 %v536
        %666 = vmatprep.subr.bf16.mxu0 %v534
        %667 = vmatpush1.bf16.msra.mxu0 %v533
        %668 = vmatprep.subr.bf16.mxu0 %v531
        %669 = vmatpush1.bf16.msra.mxu0 %v530
        %670 = vmatprep.subr.bf16.mxu0 %v528
        %671 = vmatpush1.bf16.msra.mxu0 %v527
        %672 = vmatprep.subr.bf16.mxu0 %v525
        %673 = vmatpush1.bf16.msra.mxu0 %v524
        %674 = vmatprep.subr.bf16.mxu0 %v522
        %675 = vmatpush1.bf16.msra.mxu0 %v521
        %676 = vmatprep.subr.bf16.mxu0 %v519
        %677 = vmatpush1.bf16.msra.mxu0 %v518
        %678 = vmatprep.subr.bf16.mxu0 %v564
        %679 = vmatpush2.bf16.msra.mxu0 %v563
        %680 = vmatprep.subr.bf16.mxu0 %v561
        %681 = vmatpush2.bf16.msra.mxu0 %v560
        %682 = vmatprep.subr.bf16.mxu0 %v558
        %683 = vmatpush2.bf16.msra.mxu0 %v557
        %684 = vmatprep.subr.bf16.mxu0 %v555
        %685 = vmatpush2.bf16.msra.mxu0 %v554
        %686 = vmatprep.subr.bf16.mxu0 %v552
        %687 = vmatpush2.bf16.msra.mxu0 %v551
        %688 = vmatprep.subr.bf16.mxu0 %v549
        %689 = vmatpush2.bf16.msra.mxu0 %v548
        %690 = vmatprep.subr.bf16.mxu0 %v546
        %691 = vmatpush2.bf16.msra.mxu0 %v545
        %692 = vmatprep.subr.bf16.mxu0 %v543
        %693 = vmatpush2.bf16.msra.mxu0 %v542
        %694 = vmatprep.mubr.bf16.mxu0 %v180
        %695 = vmatmul.mubr.bf16.gmra.mxu0 %v179
        %v696 = vpop.f32.mrf.mxu0
        %v697 = vadd.f32 0.0, %v696
        %v698 = vpop.f32.mrf.mxu0
        %v699 = vadd.f32 0.0, %v698
        %v700 = vpop.f32.mrf.mxu0
        %v701 = vpop.f32.mrf.mxu0
        %702 = vdwg.mxu0
        %703 = vmatprep.subr.bf16.mxu0 %v588
        %704 = vmatpush1.bf16.msra.mxu0 %v587
        %705 = vmatprep.subr.bf16.mxu0 %v585
        %706 = vmatpush1.bf16.msra.mxu0 %v584
        %707 = vmatprep.subr.bf16.mxu0 %v582
        %708 = vmatpush1.bf16.msra.mxu0 %v581
        %709 = vmatprep.subr.bf16.mxu0 %v579
        %710 = vmatpush1.bf16.msra.mxu0 %v578
        %711 = vmatprep.subr.bf16.mxu0 %v576
        %712 = vmatpush1.bf16.msra.mxu0 %v575
        %713 = vmatprep.subr.bf16.mxu0 %v573
        %714 = vmatpush1.bf16.msra.mxu0 %v572
        %715 = vmatprep.subr.bf16.mxu0 %v570
        %716 = vmatpush1.bf16.msra.mxu0 %v569
        %717 = vmatprep.subr.bf16.mxu0 %v567
        %718 = vmatpush1.bf16.msra.mxu0 %v566
        %719 = vmatprep.subr.bf16.mxu0 0
        %720 = vmatpush2.bf16.msra.mxu0 0
        %721 = vmatprep.subr.bf16.mxu0 0
        %722 = vmatpush2.bf16.msra.mxu0 0
        %723 = vmatprep.subr.bf16.mxu0 0
        %724 = vmatpush2.bf16.msra.mxu0 0
        %725 = vmatprep.subr.bf16.mxu0 0
        %726 = vmatpush2.bf16.msra.mxu0 0
        %727 = vmatprep.subr.bf16.mxu0 0
        %728 = vmatpush2.bf16.msra.mxu0 0
        %729 = vmatprep.subr.bf16.mxu0 0
        %730 = vmatpush2.bf16.msra.mxu0 0
        %731 = vmatprep.subr.bf16.mxu0 0
        %732 = vmatpush2.bf16.msra.mxu0 0
        %733 = vmatprep.subr.bf16.mxu0 0
        %734 = vmatpush2.bf16.msra.mxu0 0
        %735 = vmatprep.mubr.bf16.mxu0 0
        %736 = vmatmul.mubr.bf16.gmra.mxu0 %v181
        %v737 = vpop.f32.mrf.mxu0
        %v738 = vadd.f32 %v697, %v737
        %v739 = vpop.f32.mrf.mxu0
        %v740 = vadd.f32 %v699, %v739
        %v741 = vpop.f32.mrf.mxu0
        %v742 = vpop.f32.mrf.mxu0
        %743 = vdwg.mxu0
        %744 = vmatprep.subr.bf16.mxu0 0
        %745 = vmatpush1.bf16.msra.mxu0 %v541
        %746 = vmatprep.subr.bf16.mxu0 0
        %747 = vmatpush1.bf16.msra.mxu0 %v538
        %748 = vmatprep.subr.bf16.mxu0 0
        %749 = vmatpush1.bf16.msra.mxu0 %v535
        %750 = vmatprep.subr.bf16.mxu0 0
        %751 = vmatpush1.bf16.msra.mxu0 %v532
        %752 = vmatprep.subr.bf16.mxu0 0
        %753 = vmatpush1.bf16.msra.mxu0 %v529
        %754 = vmatprep.subr.bf16.mxu0 0
        %755 = vmatpush1.bf16.msra.mxu0 %v526
        %756 = vmatprep.subr.bf16.mxu0 0
        %757 = vmatpush1.bf16.msra.mxu0 %v523
        %758 = vmatprep.subr.bf16.mxu0 0
        %759 = vmatpush1.bf16.msra.mxu0 %v520
        %760 = vmatprep.subr.bf16.mxu0 0
        %761 = vmatpush2.bf16.msra.mxu0 %v565
        %762 = vmatprep.subr.bf16.mxu0 0
        %763 = vmatpush2.bf16.msra.mxu0 %v562
        %764 = vmatprep.subr.bf16.mxu0 0
        %765 = vmatpush2.bf16.msra.mxu0 %v559
        %766 = vmatprep.subr.bf16.mxu0 0
        %767 = vmatpush2.bf16.msra.mxu0 %v556
        %768 = vmatprep.subr.bf16.mxu0 0
        %769 = vmatpush2.bf16.msra.mxu0 %v553
        %770 = vmatprep.subr.bf16.mxu0 0
        %771 = vmatpush2.bf16.msra.mxu0 %v550
        %772 = vmatprep.subr.bf16.mxu0 0
        %773 = vmatpush2.bf16.msra.mxu0 %v547
        %774 = vmatprep.subr.bf16.mxu0 0
        %775 = vmatpush2.bf16.msra.mxu0 %v544
        %776 = vmatprep.mubr.bf16.mxu0 %v180
        %777 = vmatmul.mubr.bf16.gmra.mxu0 %v179
        %v778 = vpop.f32.mrf.mxu0
        %v779 = vadd.f32 0.0, %v778
        %v780 = vpop.f32.mrf.mxu0
        %v781 = vpop.f32.mrf.mxu0
        %v782 = vpop.f32.mrf.mxu0
        %783 = vdwg.mxu0
        %784 = vmatprep.subr.bf16.mxu0 0
        %785 = vmatpush1.bf16.msra.mxu0 %v589
        %786 = vmatprep.subr.bf16.mxu0 0
        %787 = vmatpush1.bf16.msra.mxu0 %v586
        %788 = vmatprep.subr.bf16.mxu0 0
        %789 = vmatpush1.bf16.msra.mxu0 %v583
        %790 = vmatprep.subr.bf16.mxu0 0
        %791 = vmatpush1.bf16.msra.mxu0 %v580
        %792 = vmatprep.subr.bf16.mxu0 0
        %793 = vmatpush1.bf16.msra.mxu0 %v577
        %794 = vmatprep.subr.bf16.mxu0 0
        %795 = vmatpush1.bf16.msra.mxu0 %v574
        %796 = vmatprep.subr.bf16.mxu0 0
        %797 = vmatpush1.bf16.msra.mxu0 %v571
        %798 = vmatprep.subr.bf16.mxu0 0
        %799 = vmatpush1.bf16.msra.mxu0 %v568
        %800 = vmatprep.subr.bf16.mxu0 0
        %801 = vmatpush2.bf16.msra.mxu0 0
        %802 = vmatprep.subr.bf16.mxu0 0
        %803 = vmatpush2.bf16.msra.mxu0 0
        %804 = vmatprep.subr.bf16.mxu0 0
        %805 = vmatpush2.bf16.msra.mxu0 0
        %806 = vmatprep.subr.bf16.mxu0 0
        %807 = vmatpush2.bf16.msra.mxu0 0
        %808 = vmatprep.subr.bf16.mxu0 0
        %809 = vmatpush2.bf16.msra.mxu0 0
        %810 = vmatprep.subr.bf16.mxu0 0
        %811 = vmatpush2.bf16.msra.mxu0 0
        %812 = vmatprep.subr.bf16.mxu0 0
        %813 = vmatpush2.bf16.msra.mxu0 0
        %814 = vmatprep.subr.bf16.mxu0 0
        %815 = vmatpush2.bf16.msra.mxu0 0
        %816 = vmatprep.mubr.bf16.mxu0 0
        %817 = vmatmul.mubr.bf16.gmra.mxu0 %v181
        %v818 = vpop.f32.mrf.mxu0
        %v819 = vadd.f32 %v779, %v818
        %v820 = vpop.f32.mrf.mxu0
        %v821 = vpop.f32.mrf.mxu0
        %v822 = vpop.f32.mrf.mxu0
        %823 = vdwg.mxu0
        %v824 = vpack.c.bf16 %v738, %v738
        %v825 = vpack.c.bf16 %v740, %v740
        %826 = vmatprep.subr.bf16.mxu0 0
        %827 = vmatpush1.bf16.xpose.msra.mxu0 0
        %828 = vmatprep.subr.bf16.mxu0 0
        %829 = vmatpush1.bf16.xpose.msra.mxu0 0
        %830 = vmatprep.subr.bf16.mxu0 0
        %831 = vmatpush1.bf16.xpose.msra.mxu0 0
        %832 = vmatprep.subr.bf16.mxu0 0
        %833 = vmatpush1.bf16.xpose.msra.mxu0 0
        %834 = vmatprep.subr.bf16.mxu0 0
        %835 = vmatpush1.bf16.xpose.msra.mxu0 0
        %836 = vmatprep.subr.bf16.mxu0 0
        %837 = vmatpush1.bf16.xpose.msra.mxu0 0
        %838 = vmatprep.subr.bf16.mxu0 0
        %839 = vmatpush1.bf16.xpose.msra.mxu0 0
        %840 = vmatprep.subr.bf16.mxu0 0
        %841 = vmatpush1.bf16.xpose.msra.mxu0 %v825
        %842 = vmatprep.subr.bf16.mxu0 0
        %843 = vmatpush2.bf16.xpose.msra.mxu0 0
        %844 = vmatprep.subr.bf16.mxu0 0
        %845 = vmatpush2.bf16.xpose.msra.mxu0 0
        %846 = vmatprep.subr.bf16.mxu0 0
        %847 = vmatpush2.bf16.xpose.msra.mxu0 0
        %848 = vmatprep.subr.bf16.mxu0 0
        %849 = vmatpush2.bf16.xpose.msra.mxu0 0
        %850 = vmatprep.subr.bf16.mxu0 0
        %851 = vmatpush2.bf16.xpose.msra.mxu0 0
        %852 = vmatprep.subr.bf16.mxu0 0
        %853 = vmatpush2.bf16.xpose.msra.mxu0 0
        %854 = vmatprep.subr.bf16.mxu0 0
        %855 = vmatpush2.bf16.xpose.msra.mxu0 0
        %856 = vmatprep.subr.bf16.mxu0 0
        %857 = vmatpush2.bf16.xpose.msra.mxu0 0
        %858 = vmatprep.mubr.bf16.mxu0 0
        %859 = vmatmul.mubr.bf16.gmra.mxu0 %v824
        %v860 = vpop.f32.mrf.mxu0
        %v861 = vadd.f32 0.0, %v860
        %v862 = vpop.f32.mrf.mxu0
        %v863 = vpop.f32.mrf.mxu0
        %v864 = vpop.f32.mrf.mxu0
        %865 = vdwg.mxu0
        %v866 = vlaneseq
        %v867 = vshrl.u32 %v866, 7
        %v868 = vlaneseq
        %v869 = vand.u32 %v868, 127
        %vm870 = vcmp.ge.s32.totalorder %v867, %v869
        %v871 = vsel %vm870, %v861, -inf
        %vm872 = vcmask 64512
        %v873 = vsel %vm872, %v871, -inf
        %874 = vmax.xlane.f32.xlu0 %v873
        %v875 = vpop.xlane.xlu0 %874
        %v876 = vsub.f32 %v871, %v875
        %v877 = vmul.f32 %v876, 1.442695
        %v878 = vpow.pop %v877
        %v879 = vsel %vm872, %v878, 0.0
        %880 = vadd.xlane.f32.xlu0 %v879
        %v881 = vpop.xlane.xlu0 %880
        %v882 = vpack.c.bf16 %v878, %v878
        %v883 = vpack.c.bf16 %v819, %v819
        %v885 = vsel %vm872, %v882, 0
        %vm887 = vcmask 1043456
        %v889 = vsel %vm887, %v883, 0
        %891 = vmatprep.subr.bf16.mxu0 0
        %892 = vmatpush1.bf16.msra.mxu0 0
        %893 = vmatprep.subr.bf16.mxu0 0
        %894 = vmatpush1.bf16.msra.mxu0 0
        %895 = vmatprep.subr.bf16.mxu0 0
        %896 = vmatpush1.bf16.msra.mxu0 0
        %897 = vmatprep.subr.bf16.mxu0 0
        %898 = vmatpush1.bf16.msra.mxu0 0
        %899 = vmatprep.subr.bf16.mxu0 0
        %900 = vmatpush1.bf16.msra.mxu0 0
        %901 = vmatprep.subr.bf16.mxu0 0
        %902 = vmatpush1.bf16.msra.mxu0 0
        %903 = vmatprep.subr.bf16.mxu0 0
        %904 = vmatpush1.bf16.msra.mxu0 0
        %905 = vmatprep.subr.bf16.mxu0 0
        %906 = vmatpush1.bf16.msra.mxu0 %v889
        %907 = vmatprep.subr.bf16.mxu0 0
        %908 = vmatpush2.bf16.msra.mxu0 0
        %909 = vmatprep.subr.bf16.mxu0 0
        %910 = vmatpush2.bf16.msra.mxu0 0
        %911 = vmatprep.subr.bf16.mxu0 0
        %912 = vmatpush2.bf16.msra.mxu0 0
        %913 = vmatprep.subr.bf16.mxu0 0
        %914 = vmatpush2.bf16.msra.mxu0 0
        %915 = vmatprep.subr.bf16.mxu0 0
        %916 = vmatpush2.bf16.msra.mxu0 0
        %917 = vmatprep.subr.bf16.mxu0 0
        %918 = vmatpush2.bf16.msra.mxu0 0
        %919 = vmatprep.subr.bf16.mxu0 0
        %920 = vmatpush2.bf16.msra.mxu0 0
        %921 = vmatprep.subr.bf16.mxu0 0
        %922 = vmatpush2.bf16.msra.mxu0 0
        %923 = vmatprep.mubr.bf16.mxu0 0
        %924 = vmatmul.mubr.bf16.gmra.mxu0 %v885
        %v925 = vpop.f32.mrf.mxu0
        %v926 = vadd.f32 0.0, %v925
        %v927 = vpop.f32.mrf.mxu0
        %v928 = vpop.f32.mrf.mxu0
        %v929 = vpop.f32.mrf.mxu0
        %930 = vdwg.mxu0
        %v931 = vrcp.pop %v881
        %v932 = vmul.f32 %v926, %v931
        %933 = vst [vmem:[%s174] sm:$0xff] %v932
        %s934 = sand.u32 %s75, 1
        %s935 = scalar_lea.sflag [#allocation4], %s934
        %s936 = sand.u32 %s75, 1
        %s937 = smul.addr %s936, 8
        %s938 = scalar_lea.vmem [#allocation7], %s937
        // Predicated region
        $region37: #{tpu_custom_call.1} parent=27 // pred_check
          %p939 = pneg %p85
        $region38: #{tpu_custom_call.1} parent=27 // pred_check_branch
          %941 = sbr.rel (%p939) target = $region40
        $region39: #{tpu_custom_call.1} parent=27 // pred_region
          %s943 = ssub.s32 128, 128
          %944 = vsyncadd %s935, %s943
          %s945 = smul.addr %s20, 128
          %s946 = scalar_lea.hbm %s2, %s945
          %s948 = sshll.u32 %s938, 4
          %s949 = int_to_ptr.vmem [resolvable:$true] %s948
          %951 = dma.vmem_to_hbm [thread:$0]  %s949, 128, %s946, %s935
        $region40: #{tpu_custom_call.1} parent=27 // pred_fallthru
          _
      $region28: #{tpu_custom_call.1} parent=5 // pred_fallthru
        _
      %p952 = scmp.le.s32.totalorder 2, %s15
      // Predicated region
      $region41: #{tpu_custom_call.1} parent=5 // pred_check
        %p953 = pneg %p952
      $region42: #{tpu_custom_call.1} parent=5 // pred_check_branch
        %955 = sbr.rel (%p953) target = $region44
      $region43: #{tpu_custom_call.1} parent=5 // pred_region
        %s956 = ssub.s32 %s15, 2
        // Predicated region
        $region45: #{tpu_custom_call.1} parent=43 // pred_check
          %p957 = pneg %p91
        $region46: #{tpu_custom_call.1} parent=43 // pred_check_branch
          %959 = sbr.rel (%p957) target = $region48
        $region47: #{tpu_custom_call.1} parent=43 // pred_region
          %s960 = sand.u32 %s76, 1
          %s961 = scalar_lea.sflag [#allocation4], %s960
          %s962 = sand.u32 %s76, 1
          %s963 = smul.addr %s962, 8
          %s964 = scalar_lea.vmem [#allocation7], %s963
          %965 = dma.done %s961, 128
        $region48: #{tpu_custom_call.1} parent=43 // pred_fallthru
          _
      $region44: #{tpu_custom_call.1} parent=5 // pred_fallthru
        _
    $region6: #{tpu_custom_call.1} parent=1 // loop_footer
      %s19 = sadd.s32 1, %s15
    $region7: #{tpu_custom_call.1} parent=1 // loop_footer_branch
      %14 = sbr.rel target = $region3
    $region8: #{tpu_custom_call.1} parent=1 // loop_exit
      _
    %966 = vsyncpa [#allocation3], 1
    %s967 = scalar_lea.sflag [#allocation3], 1
    %968 = vsyncpa %s967, 1
    %969 = vsyncpa [#allocation6], 1
    %970 = vsyncpa [#allocation4], 1
    %s971 = scalar_lea.sflag [#allocation4], 1
    %972 = vsyncpa %s971, 1

</llo_original>
